<compile_context>
chip_gen: v5e
topology: v5e:2x2
jax: 0.10.0
libtpu: 0.0.40
codegen_flags: <defaults>
</compile_context>

<pallas_src>
import functools

import numpy as np
import jax
import jax.numpy as jnp
from jax.experimental import pallas as pl
from jax.experimental.pallas import tpu as pltpu

# ---------------- model hyper-parameters (small, consistent with the module) ----------------
WSEQ = 8          # decoder (word) sequence length
PSEQ = 16         # encoder (image/patch) sequence length
WEMB_DIM = 32     # word embedding dim
PEMB_DIM = 32     # patch embedding dim
NEW_DIM = 32      # projected attention dim
NUM_HEADS = 4
HEAD_DIM = NEW_DIM // NUM_HEADS
HIDDEN_FF = 64
# voc_size from __init__ is unused in forward(); omitted.

BLOCK_B = 256     # batch items per grid step (few-MiB VMEM footprint; fits v7x 64 MiB easily)

# ---------------- packed-slab layout: every sub-tensor at a 128-aligned column ----------------
# weight slab (bf16)
WQ_C, WK_C, WV_C, WW_C, W1_C, W2_C = 0, 128, 256, 384, 512, 640
WPACK_COLS, WPACK_ROWS = 768, 64          # rows = max fan-in (64 for w2)
# constants slab (f32)
BQ_C, BK_C, BV_C, BW_C, B1_C, B2_C, MASK_C, BLK_C = 0, 128, 256, 384, 512, 640, 768, 896
CPACK_COLS, CPACK_ROWS = 1024, 32         # rows = NUM_HEADS * WSEQ


def get_position_encoding(seq_len, d, n=10000):
    """Vectorized equivalent of the PyTorch getPositionEncoding (d assumed even)."""
    k = np.arange(seq_len, dtype=np.float64)[:, None]
    i = np.arange(d // 2, dtype=np.float64)[None, :]
    denom = np.power(float(n), 2.0 * i / d)
    P = np.zeros((seq_len, d), dtype=np.float32)
    P[:, 0::2] = np.sin(k / denom).astype(np.float32)
    P[:, 1::2] = np.cos(k / denom).astype(np.float32)
    return P


# ---------------------------------- Pallas kernel ----------------------------------
def decoder_kernel(wemb_ref, pemb_ref, wpack_ref, cpack_ref, out_ref):
    bb = wemb_ref.shape[0] // WSEQ        # batch items in this grid step (static)

    # ---- bf16 weights, each at a 128-lane-aligned column block (scale folded into wq) ----
    wq = wpack_ref[0:WEMB_DIM, WQ_C:WQ_C + NEW_DIM]
    wk = wpack_ref[0:PEMB_DIM, WK_C:WK_C + NEW_DIM]
    wv = wpack_ref[0:PEMB_DIM, WV_C:WV_C + NEW_DIM]
    ww = wpack_ref[0:NEW_DIM, WW_C:WW_C + WEMB_DIM]
    w1 = wpack_ref[0:WEMB_DIM, W1_C:W1_C + HIDDEN_FF]
    w2 = wpack_ref[0:HIDDEN_FF, W2_C:W2_C + WEMB_DIM]

    # ---- f32 constants (biases, masks); pos-enc + scale are folded into bq_pos ----
    bq_pos = cpack_ref[0:WSEQ, BQ_C:BQ_C + NEW_DIM]                      # (8, 32)
    bk = cpack_ref[0:1, BK_C:BK_C + NEW_DIM]
    bv = cpack_ref[0:1, BV_C:BV_C + NEW_DIM]
    bw = cpack_ref[0:1, BW_C:BW_C + WEMB_DIM]
    b1 = cpack_ref[0:1, B1_C:B1_C + HIDDEN_FF]
    b2 = cpack_ref[0:1, B2_C:B2_C + WEMB_DIM]
    attn_mask = cpack_ref[0:NUM_HEADS * WSEQ, MASK_C:MASK_C + PSEQ]      # (32, 16)
    blk_mask = cpack_ref[0:NUM_HEADS * WSEQ, BLK_C:BLK_C + NEW_DIM]      # (32, 32)

    # ---- Q / K / V projections: three big lane-0-aligned MXU matmuls over the batch block ----
    q = jnp.dot(wemb_ref[...], wq, preferred_element_type=jnp.float32)   # (bb*8, 32)
    q = q.reshape(bb, WSEQ, NEW_DIM) + bq_pos                            # + (pos @ wq*s + bq*s)
    k = jnp.dot(pemb_ref[...], wk, preferred_element_type=jnp.float32)   # (bb*16, 32)
    k = k.reshape(bb, PSEQ, NEW_DIM) + bk
    v = jnp.dot(pemb_ref[...], wv, preferred_element_type=jnp.float32)   # (bb*16, 32)
    v = v.reshape(bb, PSEQ, NEW_DIM) + bv

    # ---- all-head scores: block-diagonal Q stacked along sublanes, batched over items ----
    q_bd = jnp.concatenate([q] * NUM_HEADS, axis=1) * blk_mask           # (bb, 32, 32)
    scores = jnp.einsum("bqd,bkd->bqk",
                        q_bd.astype(jnp.bfloat16), k.astype(jnp.bfloat16),
                        preferred_element_type=jnp.float32)              # (bb, 32, 16)
    scores = scores + attn_mask

    # ---- single softmax over the sublane-stacked heads (divide on EUP) ----
    m = jnp.max(scores, axis=-1, keepdims=True)
    e = jnp.exp(scores - m)
    soft = e * pl.reciprocal(jnp.sum(e, axis=-1, keepdims=True), approx=True)

    # ---- all-head (soft @ V) in one batched matmul, block-diag extraction == head concat ----
    t = jnp.einsum("bqk,bkd->bqd",
                   soft.astype(jnp.bfloat16), v.astype(jnp.bfloat16),
                   preferred_element_type=jnp.float32) * blk_mask        # (bb, 32, 32)
    sim = (t[:, 0 * WSEQ:1 * WSEQ, :] + t[:, 1 * WSEQ:2 * WSEQ, :]
           + t[:, 2 * WSEQ:3 * WSEQ, :] + t[:, 3 * WSEQ:4 * WSEQ, :])    # (bb, 8, 32)

    # ---- output projection + feed-forward as big-M matmuls over all bb*8 rows ----
    sflat = sim.reshape(bb * WSEQ, NEW_DIM).astype(jnp.bfloat16)
    og = jnp.dot(sflat, ww, preferred_element_type=jnp.float32) + bw
    h1 = jnp.maximum(jnp.dot(og.astype(jnp.bfloat16), w1,
                             preferred_element_type=jnp.float32) + b1, 0.0)
    out_ref[...] = jnp.dot(h1.astype(jnp.bfloat16), w2,
                           preferred_element_type=jnp.float32) + b2


# ---------------------------------- host-side packing (done ONCE) ----------------------------------
def pack_params(params):
    """Pack weights (bf16) and constants (f32) into two lane-aligned slabs. Call once, reuse."""
    scale = np.float32(1.0 / np.sqrt(HEAD_DIM))
    f32 = lambda a: jnp.asarray(a, jnp.float32)

    wq_s = f32(params["wq"]) * scale
    pos = jnp.asarray(get_position_encoding(WSEQ, WEMB_DIM))
    bq_pos = pos @ wq_s + f32(params["bq"]).reshape(1, NEW_DIM) * scale   # (8,32) pos folded in

    wpack = jnp.zeros((WPACK_ROWS, WPACK_COLS), jnp.float32)
    wpack = wpack.at[0:WEMB_DIM, WQ_C:WQ_C + NEW_DIM].set(wq_s)
    wpack = wpack.at[0:PEMB_DIM, WK_C:WK_C + NEW_DIM].set(f32(params["wk"]))
    wpack = wpack.at[0:PEMB_DIM, WV_C:WV_C + NEW_DIM].set(f32(params["wv"]))
    wpack = wpack.at[0:NEW_DIM, WW_C:WW_C + WEMB_DIM].set(f32(params["ww"]))
    wpack = wpack.at[0:WEMB_DIM, W1_C:W1_C + HIDDEN_FF].set(f32(params["w1"]))
    wpack = wpack.at[0:HIDDEN_FF, W2_C:W2_C + WEMB_DIM].set(f32(params["w2"]))
    wpack = wpack.astype(jnp.bfloat16)

    cpack = jnp.zeros((CPACK_ROWS, CPACK_COLS), jnp.float32)
    cpack = cpack.at[0:WSEQ, BQ_C:BQ_C + NEW_DIM].set(bq_pos)
    cpack = cpack.at[0:1, BK_C:BK_C + NEW_DIM].set(f32(params["bk"]).reshape(1, NEW_DIM))
    cpack = cpack.at[0:1, BV_C:BV_C + NEW_DIM].set(f32(params["bv"]).reshape(1, NEW_DIM))
    cpack = cpack.at[0:1, BW_C:BW_C + WEMB_DIM].set(f32(params["bw"]).reshape(1, WEMB_DIM))
    cpack = cpack.at[0:1, B1_C:B1_C + HIDDEN_FF].set(f32(params["b1"]).reshape(1, HIDDEN_FF))
    cpack = cpack.at[0:1, B2_C:B2_C + WEMB_DIM].set(f32(params["b2"]).reshape(1, WEMB_DIM))

    # attention mask (torch.triu(..., diagonal=1) * -1e9), replicated per head along sublanes
    triu = np.triu(np.ones((WSEQ, PSEQ), np.float32), k=1) * np.float32(-1e9)
    cpack = cpack.at[0:NUM_HEADS * WSEQ, MASK_C:MASK_C + PSEQ].set(
        jnp.asarray(np.tile(triu, (NUM_HEADS, 1))))

    # block-diagonal head mask: rows = stacked-head sublane blocks, cols = feature blocks
    rows = np.arange(NUM_HEADS * WSEQ)[:, None] // WSEQ
    cols = np.arange(NEW_DIM)[None, :] // HEAD_DIM
    cpack = cpack.at[0:NUM_HEADS * WSEQ, BLK_C:BLK_C + NEW_DIM].set(
        jnp.asarray((rows == cols).astype(np.float32)))

    return wpack, cpack


# ---------------------------------- wrappers ----------------------------------
@functools.partial(jax.jit, static_argnames=("block_b",))
def _decoder_pallas(wemb_b, pemb_b, wpack, cpack, block_b):
    B = wemb_b.shape[0]
    bb = max(1, min(block_b, B))
    n_blk = -(-B // bb)                    # cdiv
    B_pad = n_blk * bb
    if B_pad != B:                         # zero-pad the batch to a multiple of the block
        pad = ((0, B_pad - B), (0, 0), (0, 0))
        wemb_b = jnp.pad(wemb_b, pad)
        pemb_b = jnp.pad(pemb_b, pad)

    # flatten (batch, seq) into the MXU M dimension in the wrapper (layout-preserving), bf16 DMA
    wflat = wemb_b.reshape(B_pad * WSEQ, WEMB_DIM).astype(jnp.bfloat16)
    pflat = pemb_b.reshape(B_pad * PSEQ, PEMB_DIM).astype(jnp.bfloat16)

    out_flat = pl.pallas_call(
        decoder_kernel,
        out_shape=jax.ShapeDtypeStruct((B_pad * WSEQ, WEMB_DIM), jnp.float32),
        grid=(n_blk,),
        in_specs=[
            pl.BlockSpec((bb * WSEQ, WEMB_DIM), lambda b: (b, 0)),
            pl.BlockSpec((bb * PSEQ, PEMB_DIM), lambda b: (b, 0)),
            pl.BlockSpec((WPACK_ROWS, WPACK_COLS), lambda b: (0, 0)),   # VMEM-resident across grid
            pl.BlockSpec((CPACK_ROWS, CPACK_COLS), lambda b: (0, 0)),   # VMEM-resident across grid
        ],
        out_specs=pl.BlockSpec((bb * WSEQ, WEMB_DIM), lambda b: (b, 0)),
        compiler_params=pltpu.CompilerParams(dimension_semantics=("parallel",)),
    )(wflat, pflat, wpack, cpack)

    return out_flat[:B * WSEQ].reshape(B, WSEQ, WEMB_DIM)


def decoder_forward_batched(wemb_b, pemb_b, wpack, cpack, block_b=BLOCK_B):
    """wemb_b: (B, WSEQ, 32), pemb_b: (B, PSEQ, 32) -> (B, WSEQ, 32)."""
    return _decoder_pallas(wemb_b, pemb_b, wpack, cpack, block_b=block_b)


def decoder_forward(wemb, pemb, wpack, cpack):
    """Unbatched forward matching the PyTorch module signature."""
    return decoder_forward_batched(wemb[None], pemb[None], wpack, cpack)[0]


def make_params(key):
    ks = jax.random.split(key, 12)

    def lin(kw, kb, fan_in, fan_out):
        bound = 1.0 / np.sqrt(fan_in)
        w = jax.random.uniform(kw, (fan_in, fan_out), jnp.float32, -bound, bound)
        b = jax.random.uniform(kb, (1, fan_out), jnp.float32, -bound, bound)
        return w, b

    wq, bq = lin(ks[0], ks[1], WEMB_DIM, NEW_DIM)
    wk, bk = lin(ks[2], ks[3], PEMB_DIM, NEW_DIM)
    wv, bv = lin(ks[4], ks[5], PEMB_DIM, NEW_DIM)
    ww, bw = lin(ks[6], ks[7], NEW_DIM, WEMB_DIM)
    w1, b1 = lin(ks[8], ks[9], WEMB_DIM, HIDDEN_FF)
    w2, b2 = lin(ks[10], ks[11], HIDDEN_FF, WEMB_DIM)
    return dict(wq=wq, bq=bq, wk=wk, bk=bk, wv=wv, bv=bv,
                ww=ww, bw=bw, w1=w1, b1=b1, w2=w2, b2=b2)


def decoder_reference(wemb, pemb, params):
    """Pure-JAX f32 reference mirroring the PyTorch forward, for correctness checking."""
    pos = jnp.asarray(get_position_encoding(wemb.shape[0], wemb.shape[1]))
    w = wemb + pos
    q = w @ params["wq"] + params["bq"]
    k = pemb @ params["wk"] + params["bk"]
    v = pemb @ params["wv"] + params["bv"]
    wseq, pseq = w.shape[0], pemb.shape[0]
    qh = q.reshape(wseq, NUM_HEADS, HEAD_DIM).transpose(1, 0, 2)
    kh = k.reshape(pseq, NUM_HEADS, HEAD_DIM).transpose(1, 0, 2)
    vh = v.reshape(pseq, NUM_HEADS, HEAD_DIM).transpose(1, 0, 2)
    att = jnp.einsum("hqd,hkd->hqk", qh, kh) / (HEAD_DIM ** 0.5)
    mask = jnp.triu(jnp.ones((wseq, pseq), jnp.float32), k=1) * -1e9
    att = att + mask[None]
    soft = jax.nn.softmax(att, axis=-1)
    sim = jnp.einsum("hqk,hkd->hqd", soft, vh).transpose(1, 0, 2).reshape(wseq, -1)
    og = sim @ params["ww"] + params["bw"]
    h1 = jnp.maximum(og @ params["w1"] + params["b1"], 0.0)
    return h1 @ params["w2"] + params["b2"]


if __name__ == "__main__":
    key = jax.random.PRNGKey(0)
    k_in1, k_in2, k_par = jax.random.split(key, 3)
    params = make_params(k_par)
    wpack, cpack = pack_params(params)   # packed ONCE; reused across all forward calls

    # unbatched (matches the PyTorch module interface); bf16 matmuls + approx reciprocal ->
    # compare against the f32 reference with a correspondingly loosened tolerance.
    wemb = jax.random.normal(k_in1, (WSEQ, WEMB_DIM), jnp.float32)
    pemb = jax.random.normal(k_in2, (PSEQ, PEMB_DIM), jnp.float32)
    out = jax.block_until_ready(decoder_forward(wemb, pemb, wpack, cpack))
    ref = decoder_reference(wemb, pemb, params)
    assert out.shape == (WSEQ, WEMB_DIM)
    np.testing.assert_allclose(np.asarray(out), np.asarray(ref), rtol=3e-2, atol=3e-2)

    # batched path: batch-blocked grid with >=2 steps (amortizes grid overhead; uses both TCs on v7x)
    B = 64
    kb1, kb2 = jax.random.split(k_in1)
    wemb_b = jax.random.normal(kb1, (B, WSEQ, WEMB_DIM), jnp.float32)
    pemb_b = jax.random.normal(kb2, (B, PSEQ, PEMB_DIM), jnp.float32)
    out_b = jax.block_until_ready(
        decoder_forward_batched(wemb_b, pemb_b, wpack, cpack, block_b=32))
    ref_b = jax.vmap(lambda w, p: decoder_reference(w, p, params))(wemb_b, pemb_b)
    np.testing.assert_allclose(np.asarray(out_b), np.asarray(ref_b), rtol=3e-2, atol=3e-2)

    print("KERNEL_OK")
</pallas_src>

<mosaic_0001>
module attributes {stable_mosaic.version = 11 : i64} {
  func.func @decoder_kernel(%arg0: i32, %arg1: memref<8x32xbf16, #tpu.memory_space<vmem>>, %arg2: memref<16x32xbf16, #tpu.memory_space<vmem>>, %arg3: memref<64x768xbf16, #tpu.memory_space<vmem>>, %arg4: memref<32x1024xf32, #tpu.memory_space<vmem>>, %arg5: memref<8x32xf32, #tpu.memory_space<vmem>>) attributes {dimension_semantics = [#tpu.dimension_semantics<parallel>], iteration_bounds = array<i64: 1>, scalar_prefetch = 0 : i64, scratch_operands = 0 : i64, tpu.core_type = #tpu.core_type<tc>, window_params = [{transform_indices = @transform_0, window_bounds = array<i64: 8, 32>}, {transform_indices = @transform_1, window_bounds = array<i64: 16, 32>}, {pipeline_mode = #tpu.pipeline_mode<synchronous>, transform_indices = @transform_2, window_bounds = array<i64: 64, 768>}, {pipeline_mode = #tpu.pipeline_mode<synchronous>, transform_indices = @transform_3, window_bounds = array<i64: 32, 1024>}, {transform_indices = @transform_4, window_bounds = array<i64: 8, 32>}]} {
    %c0 = arith.constant 0 : index
    %c0_0 = arith.constant 0 : index
    %0 = vector.load %arg3[%c0, %c0_0] : memref<64x768xbf16, #tpu.memory_space<vmem>>, vector<32x32xbf16>
    %c0_1 = arith.constant 0 : index
    %c128 = arith.constant 128 : index
    %1 = vector.load %arg3[%c0_1, %c128] : memref<64x768xbf16, #tpu.memory_space<vmem>>, vector<32x32xbf16>
    %c0_2 = arith.constant 0 : index
    %c256 = arith.constant 256 : index
    %2 = vector.load %arg3[%c0_2, %c256] : memref<64x768xbf16, #tpu.memory_space<vmem>>, vector<32x32xbf16>
    %c0_3 = arith.constant 0 : index
    %c384 = arith.constant 384 : index
    %3 = vector.load %arg3[%c0_3, %c384] : memref<64x768xbf16, #tpu.memory_space<vmem>>, vector<32x32xbf16>
    %c0_4 = arith.constant 0 : index
    %c512 = arith.constant 512 : index
    %4 = vector.load %arg3[%c0_4, %c512] : memref<64x768xbf16, #tpu.memory_space<vmem>>, vector<32x64xbf16>
    %c0_5 = arith.constant 0 : index
    %c640 = arith.constant 640 : index
    %5 = vector.load %arg3[%c0_5, %c640] : memref<64x768xbf16, #tpu.memory_space<vmem>>, vector<64x32xbf16>
    %c0_6 = arith.constant 0 : index
    %c0_7 = arith.constant 0 : index
    %6 = vector.load %arg4[%c0_6, %c0_7] : memref<32x1024xf32, #tpu.memory_space<vmem>>, vector<8x32xf32>
    %c0_8 = arith.constant 0 : index
    %c128_9 = arith.constant 128 : index
    %7 = vector.load %arg4[%c0_8, %c128_9] : memref<32x1024xf32, #tpu.memory_space<vmem>>, vector<1x32xf32>
    %c0_10 = arith.constant 0 : index
    %c256_11 = arith.constant 256 : index
    %8 = vector.load %arg4[%c0_10, %c256_11] : memref<32x1024xf32, #tpu.memory_space<vmem>>, vector<1x32xf32>
    %c0_12 = arith.constant 0 : index
    %c384_13 = arith.constant 384 : index
    %9 = vector.load %arg4[%c0_12, %c384_13] : memref<32x1024xf32, #tpu.memory_space<vmem>>, vector<1x32xf32>
    %c0_14 = arith.constant 0 : index
    %c512_15 = arith.constant 512 : index
    %10 = vector.load %arg4[%c0_14, %c512_15] : memref<32x1024xf32, #tpu.memory_space<vmem>>, vector<1x64xf32>
    %c0_16 = arith.constant 0 : index
    %c640_17 = arith.constant 640 : index
    %11 = vector.load %arg4[%c0_16, %c640_17] : memref<32x1024xf32, #tpu.memory_space<vmem>>, vector<1x32xf32>
    %c0_18 = arith.constant 0 : index
    %c768 = arith.constant 768 : index
    %12 = vector.load %arg4[%c0_18, %c768] : memref<32x1024xf32, #tpu.memory_space<vmem>>, vector<32x16xf32>
    %c0_19 = arith.constant 0 : index
    %c896 = arith.constant 896 : index
    %13 = vector.load %arg4[%c0_19, %c896] : memref<32x1024xf32, #tpu.memory_space<vmem>>, vector<32x32xf32>
    %c0_20 = arith.constant 0 : index
    %c0_21 = arith.constant 0 : index
    %14 = vector.load %arg1[%c0_20, %c0_21] : memref<8x32xbf16, #tpu.memory_space<vmem>>, vector<8x32xbf16>
    %cst = arith.constant dense<0.000000e+00> : vector<8x32xf32>
    %15 = tpu.matmul %14, %0, %cst {dimension_numbers = #tpu.dot_dimension_numbers<[1], [0], [0], [1], [0, 0, 1, 1], [], []>} : vector<8x32xbf16>, vector<32x32xbf16>, vector<8x32xf32> -> vector<8x32xf32>
    %16 = vector.shape_cast %15 : vector<8x32xf32> to vector<1x8x32xf32>
    %17 = vector.shape_cast %6 : vector<8x32xf32> to vector<1x8x32xf32>
    %18 = arith.addf %16, %17 : vector<1x8x32xf32>
    %c0_22 = arith.constant 0 : index
    %c0_23 = arith.constant 0 : index
    %19 = vector.load %arg2[%c0_22, %c0_23] : memref<16x32xbf16, #tpu.memory_space<vmem>>, vector<16x32xbf16>
    %cst_24 = arith.constant dense<0.000000e+00> : vector<16x32xf32>
    %20 = tpu.matmul %19, %1, %cst_24 {dimension_numbers = #tpu.dot_dimension_numbers<[1], [0], [0], [1], [0, 0, 1, 1], [], []>} : vector<16x32xbf16>, vector<32x32xbf16>, vector<16x32xf32> -> vector<16x32xf32>
    %21 = vector.shape_cast %20 : vector<16x32xf32> to vector<1x16x32xf32>
    %22 = vector.shape_cast %7 : vector<1x32xf32> to vector<1x1x32xf32>
    %23 = vector.broadcast %22 : vector<1x1x32xf32> to vector<1x16x32xf32>
    %24 = arith.addf %21, %23 : vector<1x16x32xf32>
    %c0_25 = arith.constant 0 : index
    %c0_26 = arith.constant 0 : index
    %25 = vector.load %arg2[%c0_25, %c0_26] : memref<16x32xbf16, #tpu.memory_space<vmem>>, vector<16x32xbf16>
    %cst_27 = arith.constant dense<0.000000e+00> : vector<16x32xf32>
    %26 = tpu.matmul %25, %2, %cst_27 {dimension_numbers = #tpu.dot_dimension_numbers<[1], [0], [0], [1], [0, 0, 1, 1], [], []>} : vector<16x32xbf16>, vector<32x32xbf16>, vector<16x32xf32> -> vector<16x32xf32>
    %27 = vector.shape_cast %26 : vector<16x32xf32> to vector<1x16x32xf32>
    %28 = vector.shape_cast %8 : vector<1x32xf32> to vector<1x1x32xf32>
    %29 = vector.broadcast %28 : vector<1x1x32xf32> to vector<1x16x32xf32>
    %30 = arith.addf %27, %29 : vector<1x16x32xf32>
    %31 = tpu.concatenate %18, %18, %18, %18 in 1 : vector<1x8x32xf32>, vector<1x8x32xf32>, vector<1x8x32xf32>, vector<1x8x32xf32> -> vector<1x32x32xf32>
    %32 = vector.shape_cast %13 : vector<32x32xf32> to vector<1x32x32xf32>
    %33 = arith.mulf %31, %32 : vector<1x32x32xf32>
    %34 = arith.truncf %33 : vector<1x32x32xf32> to vector<1x32x32xbf16>
    %35 = arith.truncf %24 : vector<1x16x32xf32> to vector<1x16x32xbf16>
    "tpu.trace_start"() <{level = 10 : i32, message = "bqd,bkd->bqk"}> : () -> ()
    %cst_28 = arith.constant dense<0.000000e+00> : vector<1x32x16xf32>
    %36 = tpu.matmul %34, %35, %cst_28 {dimension_numbers = #tpu.dot_dimension_numbers<[2], [2], [1], [1], [0, 0, 0, 1, 1, 1], [0], [0]>} : vector<1x32x32xbf16>, vector<1x16x32xbf16>, vector<1x32x16xf32> -> vector<1x32x16xf32>
    "tpu.trace_stop"() : () -> ()
    %37 = vector.shape_cast %12 : vector<32x16xf32> to vector<1x32x16xf32>
    %38 = arith.addf %36, %37 : vector<1x32x16xf32>
    %cst_29 = arith.constant dense<0xFF800000> : vector<1x32xf32>
    %39 = vector.multi_reduction <maximumf>, %38, %cst_29 [2] : vector<1x32x16xf32> to vector<1x32xf32>
    %40 = vector.shape_cast %39 : vector<1x32xf32> to vector<1x32x1xf32>
    %41 = vector.broadcast %40 : vector<1x32x1xf32> to vector<1x32x16xf32>
    %42 = arith.subf %38, %41 : vector<1x32x16xf32>
    %43 = math.exp %42 : vector<1x32x16xf32>
    %cst_30 = arith.constant dense<0.000000e+00> : vector<1x32xf32>
    %44 = vector.multi_reduction <add>, %43, %cst_30 [2] : vector<1x32x16xf32> to vector<1x32xf32>
    %45 = vector.shape_cast %44 : vector<1x32xf32> to vector<1x32x1xf32>
    %46 = tpu.reciprocal %45 {approx = true} : vector<1x32x1xf32> -> vector<1x32x1xf32>
    %47 = vector.broadcast %46 : vector<1x32x1xf32> to vector<1x32x16xf32>
    %48 = arith.mulf %43, %47 : vector<1x32x16xf32>
    %49 = arith.truncf %48 : vector<1x32x16xf32> to vector<1x32x16xbf16>
    %50 = arith.truncf %30 : vector<1x16x32xf32> to vector<1x16x32xbf16>
    "tpu.trace_start"() <{level = 10 : i32, message = "bqk,bkd->bqd"}> : () -> ()
    %cst_31 = arith.constant dense<0.000000e+00> : vector<1x32x32xf32>
    %51 = tpu.matmul %49, %50, %cst_31 {dimension_numbers = #tpu.dot_dimension_numbers<[2], [1], [1], [2], [0, 0, 0, 1, 1, 2], [0], [0]>} : vector<1x32x16xbf16>, vector<1x16x32xbf16>, vector<1x32x32xf32> -> vector<1x32x32xf32>
    "tpu.trace_stop"() : () -> ()
    %52 = vector.shape_cast %13 : vector<32x32xf32> to vector<1x32x32xf32>
    %53 = arith.mulf %51, %52 : vector<1x32x32xf32>
    %54 = vector.extract_strided_slice %53 {offsets = [0, 0, 0], sizes = [1, 8, 32], strides = [1, 1, 1]} : vector<1x32x32xf32> to vector<1x8x32xf32>
    %55 = vector.extract_strided_slice %53 {offsets = [0, 8, 0], sizes = [1, 8, 32], strides = [1, 1, 1]} : vector<1x32x32xf32> to vector<1x8x32xf32>
    %56 = arith.addf %54, %55 : vector<1x8x32xf32>
    %57 = vector.extract_strided_slice %53 {offsets = [0, 16, 0], sizes = [1, 8, 32], strides = [1, 1, 1]} : vector<1x32x32xf32> to vector<1x8x32xf32>
    %58 = arith.addf %56, %57 : vector<1x8x32xf32>
    %59 = vector.extract_strided_slice %53 {offsets = [0, 24, 0], sizes = [1, 8, 32], strides = [1, 1, 1]} : vector<1x32x32xf32> to vector<1x8x32xf32>
    %60 = arith.addf %58, %59 : vector<1x8x32xf32>
    %61 = vector.shape_cast %60 : vector<1x8x32xf32> to vector<8x32xf32>
    %62 = arith.truncf %61 : vector<8x32xf32> to vector<8x32xbf16>
    %cst_32 = arith.constant dense<0.000000e+00> : vector<8x32xf32>
    %63 = tpu.matmul %62, %3, %cst_32 {dimension_numbers = #tpu.dot_dimension_numbers<[1], [0], [0], [1], [0, 0, 1, 1], [], []>} : vector<8x32xbf16>, vector<32x32xbf16>, vector<8x32xf32> -> vector<8x32xf32>
    %64 = vector.broadcast %9 : vector<1x32xf32> to vector<8x32xf32>
    %65 = arith.addf %63, %64 : vector<8x32xf32>
    %66 = arith.truncf %65 : vector<8x32xf32> to vector<8x32xbf16>
    %cst_33 = arith.constant dense<0.000000e+00> : vector<8x64xf32>
    %67 = tpu.matmul %66, %4, %cst_33 {dimension_numbers = #tpu.dot_dimension_numbers<[1], [0], [0], [1], [0, 0, 1, 1], [], []>} : vector<8x32xbf16>, vector<32x64xbf16>, vector<8x64xf32> -> vector<8x64xf32>
    %68 = vector.broadcast %10 : vector<1x64xf32> to vector<8x64xf32>
    %69 = arith.addf %67, %68 : vector<8x64xf32>
    %cst_34 = arith.constant 0.000000e+00 : f32
    %70 = vector.broadcast %cst_34 : f32 to vector<8x64xf32>
    %71 = arith.maximumf %69, %70 : vector<8x64xf32>
    %72 = arith.truncf %71 : vector<8x64xf32> to vector<8x64xbf16>
    %cst_35 = arith.constant dense<0.000000e+00> : vector<8x32xf32>
    %73 = tpu.matmul %72, %5, %cst_35 {dimension_numbers = #tpu.dot_dimension_numbers<[1], [0], [0], [1], [0, 0, 1, 1], [], []>} : vector<8x64xbf16>, vector<64x32xbf16>, vector<8x32xf32> -> vector<8x32xf32>
    %74 = vector.broadcast %11 : vector<1x32xf32> to vector<8x32xf32>
    %75 = arith.addf %73, %74 : vector<8x32xf32>
    %c0_36 = arith.constant 0 : index
    %c0_37 = arith.constant 0 : index
    %76 = vector.load %arg5[%c0_36, %c0_37] : memref<8x32xf32, #tpu.memory_space<vmem>>, vector<8x32xf32>
    tpu.vector_store %arg5[%c0_36, %c0_37], %75 {strides = array<i32>} : memref<8x32xf32, #tpu.memory_space<vmem>>, vector<8x32xf32>,
    return
  }
  func.func @transform_0(%arg0: i32) -> (i32, i32) {
    %c0_i32 = arith.constant 0 : i32
    %c0_i32_0 = arith.constant 0 : i32
    return %arg0, %c0_i32 : i32, i32
  }
  func.func @transform_1(%arg0: i32) -> (i32, i32) {
    %c0_i32 = arith.constant 0 : i32
    %c0_i32_0 = arith.constant 0 : i32
    return %arg0, %c0_i32 : i32, i32
  }
  func.func @transform_2(%arg0: i32) -> (i32, i32) {
    %c0_i32 = arith.constant 0 : i32
    %c0_i32_0 = arith.constant 0 : i32
    %c0_i32_1 = arith.constant 0 : i32
    return %c0_i32, %c0_i32_0 : i32, i32
  }
  func.func @transform_3(%arg0: i32) -> (i32, i32) {
    %c0_i32 = arith.constant 0 : i32
    %c0_i32_0 = arith.constant 0 : i32
    %c0_i32_1 = arith.constant 0 : i32
    return %c0_i32, %c0_i32_0 : i32, i32
  }
  func.func @transform_4(%arg0: i32) -> (i32, i32) {
    %c0_i32 = arith.constant 0 : i32
    %c0_i32_0 = arith.constant 0 : i32
    return %arg0, %c0_i32 : i32, i32
  }
}

</mosaic_0001>

<llo_original>
// kernel: _decoder_pallas.1
$region0: #{_decoder_pallas.1}
  #allocation0 [shape = 'u32[]', space=smem, size = 0x4, offset = 0x4, fixed_abs, tag = 'smem constant byte address 0x4 - core index']
  #allocation1 [shape = 'u32[72,128]{1,0:T(1,128)}', space=vmem, size = 0x9000, scoped, tag = 'internal scratch']
  %s0 = inlined_call_operand.vmem [shape: bf16[8,32], index: 0, kind: input, shape index: {}]
  %s1 = inlined_call_operand.vmem [shape: bf16[16,32], index: 1, kind: input, shape index: {}]
  %s2 = inlined_call_operand.hbm [shape: bf16[64,768], index: 2, kind: input, shape index: {}]
  %s3 = inlined_call_operand.hbm [shape: f32[32,1024], index: 3, kind: input, shape index: {}]
  %s4 = inlined_call_operand.hbm [shape: f32[8,32], index: 4, kind: output, shape index: {}]
  %s5 = sld [smem:[#allocation0]]
  $region34: #{_decoder_pallas.1} parent=0
    _
  %s7 = ssub.s32 1, %s5
  %s8 = scalar_select 0, %s7, %s5
  $region1: #{_decoder_pallas.1} parent=0
    #allocation2 [shape = 'u8[98304]{0}', space=vmem, size = 0x18000, scoped, tag = 'input window, operand 2, single buffered']
    #allocation3 [shape = 's32[1]{0}', space=sflag, size = 0x4, scoped, tag = 'scoped memory for _decoder_pallas.1']
    #allocation4 [shape = 's32[1]{0}', space=sflag, size = 0x4, scoped, tag = 'scoped memory for _decoder_pallas.1']
    #allocation5 [shape = 'u8[131072]{0}', space=vmem, size = 0x20000, scoped, tag = 'input window, operand 3, single buffered']
    #allocation6 [shape = 's32[1]{0}', space=sflag, size = 0x4, scoped, tag = 'scoped memory for _decoder_pallas.1']
    #allocation7 [shape = 'u8[4096]{0}', space=vmem, size = 0x1000, scoped, tag = 'output window, operand 0, single buffered']
    %9 = vsyncpa [#allocation3], 0
    %10 = vsyncpa [#allocation6], 0
    %11 = vsyncpa [#allocation4], 0
    // Predicated region
    $region2: #{_decoder_pallas.1} parent=1 // pred_check
      _
    $region3: #{_decoder_pallas.1} parent=1 // pred_check_branch
      %13 = sbr.rel (0) target = $region5
    $region4: #{_decoder_pallas.1} parent=1 // pred_region
      _
    $region5: #{_decoder_pallas.1} parent=1 // pred_fallthru
      _
    // Predicated region
    $region6: #{_decoder_pallas.1} parent=1 // pred_check
      _
    $region7: #{_decoder_pallas.1} parent=1 // pred_check_branch
      %15 = sbr.rel (0) target = $region9
    $region8: #{_decoder_pallas.1} parent=1 // pred_region
      _
    $region9: #{_decoder_pallas.1} parent=1 // pred_fallthru
      _
    // Predicated region
    $region10: #{_decoder_pallas.1} parent=1 // pred_check
      _
    $region11: #{_decoder_pallas.1} parent=1 // pred_check_branch
      %17 = sbr.rel (0) target = $region13
    $region12: #{_decoder_pallas.1} parent=1 // pred_region
      %19 = vsyncadd [#allocation3], 0
      %s20 = sshll.u32 %s2, 4
      %s21 = int_to_ptr.hbm [resolvable:$true] %s20
      %s22 = sshll.u32 [#allocation2], 4
      %s23 = int_to_ptr.vmem [resolvable:$true] %s22
      %28 = dma.hbm_to_vmem [thread:$0]  %s21, 3072, %s23, [#allocation3], 384, 384, 24
    $region13: #{_decoder_pallas.1} parent=1 // pred_fallthru
      _
    // Predicated region
    $region14: #{_decoder_pallas.1} parent=1 // pred_check
      _
    $region15: #{_decoder_pallas.1} parent=1 // pred_check_branch
      %30 = sbr.rel (0) target = $region17
    $region16: #{_decoder_pallas.1} parent=1 // pred_region
      %32 = vsyncadd [#allocation6], 0
      %s33 = sshll.u32 %s3, 4
      %s34 = int_to_ptr.hbm [resolvable:$true] %s33
      %s35 = sshll.u32 [#allocation5], 4
      %s36 = int_to_ptr.vmem [resolvable:$true] %s35
      %41 = dma.hbm_to_vmem [thread:$0]  %s34, 4096, %s36, [#allocation6], 1024, 1024, 64
    $region17: #{_decoder_pallas.1} parent=1 // pred_fallthru
      _
    // Predicated region
    $region18: #{_decoder_pallas.1} parent=1 // pred_check
      _
    $region19: #{_decoder_pallas.1} parent=1 // pred_check_branch
      %43 = sbr.rel (0) target = $region21
    $region20: #{_decoder_pallas.1} parent=1 // pred_region
      %45 = dma.done [#allocation3], 3072
    $region21: #{_decoder_pallas.1} parent=1 // pred_fallthru
      _
    // Predicated region
    $region22: #{_decoder_pallas.1} parent=1 // pred_check
      _
    $region23: #{_decoder_pallas.1} parent=1 // pred_check_branch
      %47 = sbr.rel (0) target = $region25
    $region24: #{_decoder_pallas.1} parent=1 // pred_region
      %49 = dma.done [#allocation6], 4096
    $region25: #{_decoder_pallas.1} parent=1 // pred_fallthru
      _
    %v51 = vld [vmem:[#allocation2] sm:$0xf]
    %v52 = vld [vmem:[#allocation2 + $0x18] sm:$0xf]
    %v53 = vld [vmem:[#allocation2 + $0x30] sm:$0xf]
    %v54 = vld [vmem:[#allocation2 + $0x48] sm:$0xf]
    %v55 = vld [vmem:[#allocation2 + $0x4] sm:$0xf]
    %v56 = vld [vmem:[#allocation2 + $0x1c] sm:$0xf]
    %v57 = vld [vmem:[#allocation2 + $0x34] sm:$0xf]
    %v58 = vld [vmem:[#allocation2 + $0x4c] sm:$0xf]
    %v59 = vld [vmem:[#allocation2 + $0x8] sm:$0xf]
    %v60 = vld [vmem:[#allocation2 + $0x20] sm:$0xf]
    %v61 = vld [vmem:[#allocation2 + $0x38] sm:$0xf]
    %v62 = vld [vmem:[#allocation2 + $0x50] sm:$0xf]
    %v63 = vld [vmem:[#allocation2 + $0xc] sm:$0xf]
    %v64 = vld [vmem:[#allocation2 + $0x24] sm:$0xf]
    %v65 = vld [vmem:[#allocation2 + $0x3c] sm:$0xf]
    %v66 = vld [vmem:[#allocation2 + $0x54] sm:$0xf]
    %v67 = vld [vmem:[#allocation2 + $0x10] sm:$0xf]
    %v68 = vld [vmem:[#allocation2 + $0x28] sm:$0xf]
    %v69 = vld [vmem:[#allocation2 + $0x40] sm:$0xf]
    %v70 = vld [vmem:[#allocation2 + $0x58] sm:$0xf]
    %v71 = vld [vmem:[#allocation2 + $0x14] sm:$0xf]
    %v72 = vld [vmem:[#allocation2 + $0x2c] sm:$0xf]
    %v73 = vld [vmem:[#allocation2 + $0x44] sm:$0xf]
    %v74 = vld [vmem:[#allocation2 + $0x5c] sm:$0xf]
    %v75 = vld [vmem:[#allocation2 + $0x74] sm:$0xf]
    %v76 = vld [vmem:[#allocation2 + $0x8c] sm:$0xf]
    %v77 = vld [vmem:[#allocation2 + $0xa4] sm:$0xf]
    %v78 = vld [vmem:[#allocation2 + $0xbc] sm:$0xf]
    %v79 = vld [vmem:[#allocation5] sm:$0xff]
    %v80 = vld [vmem:[#allocation5 + $0x8] ss:$0 sm:$0xff]
    %v81 = vld [vmem:[#allocation5 + $0x10] ss:$0 sm:$0xff]
    %v82 = vld [vmem:[#allocation5 + $0x18] ss:$0 sm:$0xff]
    %v83 = vld [vmem:[#allocation5 + $0x20] ss:$0 sm:$0xff]
    %v84 = vld [vmem:[#allocation5 + $0x28] ss:$0 sm:$0xff]
    %v85 = vld [vmem:[#allocation5 + $0x30] sm:$0xff]
    %v86 = vld [vmem:[#allocation5 + $0x70] sm:$0xff]
    %v87 = vld [vmem:[#allocation5 + $0xb0] sm:$0xff]
    %v88 = vld [vmem:[#allocation5 + $0xf0] sm:$0xff]
    %v89 = vld [vmem:[#allocation5 + $0x38] sm:$0xff]
    %v90 = vld [vmem:[#allocation5 + $0x78] sm:$0xff]
    %v91 = vld [vmem:[#allocation5 + $0xb8] sm:$0xff]
    %v92 = vld [vmem:[#allocation5 + $0xf8] sm:$0xff]
    %v93 = vld [vmem:[%s0] sm:$0xf]
    %v98 = vunpack.c.l.b16 %v51
    %v99 = vunpack.c.l.b16 %v52
    %v100 = vunpack.c.l.b16 %v53
    %v101 = vunpack.c.l.b16 %v54
    %v102 = vpack.c.b16 %v99, %v98
    %v103 = vpack.c.b16 %v101, %v100
    %vm106 = vcmask 261120
    %v108 = vsel %vm106, %v93, 0
    %110 = vmatpush.bf16.msra.mxu0 0
    %111 = vmatpush.bf16.msra.mxu0 0
    %112 = vmatpush.bf16.msra.mxu0 0
    %113 = vmatpush.bf16.msra.mxu0 0
    %114 = vmatpush.bf16.msra.mxu0 0
    %115 = vmatpush.bf16.msra.mxu0 0
    %116 = vmatpush.bf16.msra.mxu0 %v103
    %117 = vmatpush.bf16.msra.mxu0 %v102
    %118 = vmatmul.bf16.gmra.mxu0 %v108
    %v119 = vpop.f32.mrf.mxu0
    %v120 = vadd.f32 0.0, %v119
    %v121 = vpop.f32.mrf.mxu0
    %122 = vdwg.mxu0
    %v123 = vadd.f32 %v120, %v79
    %v124 = vld [vmem:[%s1] sm:$0xf]
    %v125 = vld [vmem:[%s1 + $0x4] sm:$0xf]
    %v128 = vunpack.c.l.b16 %v124
    %v129 = vunpack.c.l.b16 %v125
    %v130 = vpack.c.b16 %v129, %v128
    %v135 = vunpack.c.l.b16 %v55
    %v136 = vunpack.c.l.b16 %v56
    %v137 = vunpack.c.l.b16 %v57
    %v138 = vunpack.c.l.b16 %v58
    %v139 = vpack.c.b16 %v136, %v135
    %v140 = vpack.c.b16 %v138, %v137
    %v144 = vsel %vm106, %v130, 0
    %146 = vmatpush.bf16.msra.mxu0 0
    %147 = vmatpush.bf16.msra.mxu0 0
    %148 = vmatpush.bf16.msra.mxu0 0
    %149 = vmatpush.bf16.msra.mxu0 0
    %150 = vmatpush.bf16.msra.mxu0 0
    %151 = vmatpush.bf16.msra.mxu0 0
    %152 = vmatpush.bf16.msra.mxu0 %v140
    %153 = vmatpush.bf16.msra.mxu0 %v139
    %154 = vmatmul.bf16.gmra.mxu0 %v144
    %v155 = vpop.f32.mrf.mxu0
    %v156 = vadd.f32 0.0, %v155
    %v157 = vpop.f32.mrf.mxu0
    %v158 = vadd.f32 0.0, %v157
    %159 = vdwg.mxu0
    %v160 = vadd.f32 %v156, %v80
    %v161 = vadd.f32 %v158, %v80
    %v166 = vunpack.c.l.b16 %v59
    %v167 = vunpack.c.l.b16 %v60
    %v168 = vunpack.c.l.b16 %v61
    %v169 = vunpack.c.l.b16 %v62
    %v170 = vpack.c.b16 %v167, %v166
    %v171 = vpack.c.b16 %v169, %v168
    %174 = vmatpush.bf16.msra.mxu0 0
    %175 = vmatpush.bf16.msra.mxu0 0
    %176 = vmatpush.bf16.msra.mxu0 0
    %177 = vmatpush.bf16.msra.mxu0 0
    %178 = vmatpush.bf16.msra.mxu0 0
    %179 = vmatpush.bf16.msra.mxu0 0
    %180 = vmatpush.bf16.msra.mxu0 %v171
    %181 = vmatpush.bf16.msra.mxu0 %v170
    %182 = vmatmul.bf16.gmra.mxu0 %v144
    %v183 = vpop.f32.mrf.mxu0
    %v184 = vadd.f32 0.0, %v183
    %v185 = vpop.f32.mrf.mxu0
    %v186 = vadd.f32 0.0, %v185
    %187 = vdwg.mxu0
    %v188 = vadd.f32 %v184, %v81
    %v189 = vadd.f32 %v186, %v81
    %v190 = vmul.f32 %v123, %v89
    %v191 = vmul.f32 %v123, %v90
    %v192 = vmul.f32 %v123, %v91
    %v193 = vmul.f32 %v123, %v92
    %v194 = vpack.c.bf16 %v190, %v190
    %v195 = vpack.c.bf16 %v191, %v191
    %v196 = vpack.c.bf16 %v192, %v192
    %v197 = vpack.c.bf16 %v193, %v193
    %v198 = vpack.c.bf16 %v160, %v160
    %v199 = vpack.c.bf16 %v161, %v161
    %v204 = vunpack.c.l.b16 %v194
    %v205 = vunpack.c.l.b16 %v195
    %v206 = vunpack.c.l.b16 %v196
    %v207 = vunpack.c.l.b16 %v197
    %v208 = vpack.c.b16 %v205, %v204
    %v209 = vpack.c.b16 %v207, %v206
    %v212 = vunpack.c.l.b16 %v198
    %v213 = vunpack.c.l.b16 %v199
    %v214 = vpack.c.b16 %v213, %v212
    %v216 = vsel %vm106, %v208, 0
    %v219 = vsel %vm106, %v209, 0
    %v222 = vsel %vm106, %v214, 0
    %224 = vmatpush.bf16.xpose.msra.mxu0 0
    %225 = vmatpush.bf16.xpose.msra.mxu0 0
    %226 = vmatpush.bf16.xpose.msra.mxu0 0
    %227 = vmatpush.bf16.xpose.msra.mxu0 0
    %228 = vmatpush.bf16.xpose.msra.mxu0 0
    %229 = vmatpush.bf16.xpose.msra.mxu0 0
    %230 = vmatpush.bf16.xpose.msra.mxu0 0
    %231 = vmatpush.bf16.xpose.msra.mxu0 %v222
    %232 = vmatmul.bf16.gmra.mxu0 %v216
    %v233 = vpop.f32.mrf.mxu0
    %v234 = vadd.f32 %v85, %v233
    %v235 = vpop.f32.mrf.mxu0
    %v236 = vadd.f32 %v86, %v235
    %237 = vmatmul.bf16.gmra.mxu0 %v219
    %v238 = vpop.f32.mrf.mxu0
    %v239 = vadd.f32 %v87, %v238
    %v240 = vpop.f32.mrf.mxu0
    %v241 = vadd.f32 %v88, %v240
    %242 = vdwg.mxu0
    %vm243 = vcmask 130048
    %v244 = vsel %vm243, %v234, -inf
    %245 = vmax.xlane.f32.xlu0 %v244
    %v246 = vpop.xlane.xlu0 %245
    %v247 = vsel %vm243, %v236, -inf
    %248 = vmax.xlane.f32.xlu0 %v247
    %v249 = vpop.xlane.xlu0 %248
    %v250 = vsel %vm243, %v239, -inf
    %251 = vmax.xlane.f32.xlu0 %v250
    %v252 = vpop.xlane.xlu0 %251
    %v253 = vsel %vm243, %v241, -inf
    %254 = vmax.xlane.f32.xlu0 %v253
    %v255 = vpop.xlane.xlu0 %254
    %v256 = vsub.f32 %v234, %v246
    %v257 = vsub.f32 %v236, %v249
    %v258 = vsub.f32 %v239, %v252
    %v259 = vsub.f32 %v241, %v255
    %v260 = vmul.f32 %v256, 1.442695
    %v261 = vpow.pop %v260
    %v262 = vmul.f32 %v257, 1.442695
    %v263 = vpow.pop %v262
    %v264 = vmul.f32 %v258, 1.442695
    %v265 = vpow.pop %v264
    %v266 = vmul.f32 %v259, 1.442695
    %v267 = vpow.pop %v266
    %v268 = vsel %vm243, %v261, 0.0
    %269 = vadd.xlane.f32.xlu0 %v268
    %v270 = vpop.xlane.xlu0 %269
    %v271 = vsel %vm243, %v263, 0.0
    %272 = vadd.xlane.f32.xlu0 %v271
    %v273 = vpop.xlane.xlu0 %272
    %v274 = vsel %vm243, %v265, 0.0
    %275 = vadd.xlane.f32.xlu0 %v274
    %v276 = vpop.xlane.xlu0 %275
    %v277 = vsel %vm243, %v267, 0.0
    %278 = vadd.xlane.f32.xlu0 %v277
    %v279 = vpop.xlane.xlu0 %278
    %v280 = vrcp.pop %v270
    %v281 = vrcp.pop %v273
    %v282 = vrcp.pop %v276
    %v283 = vrcp.pop %v279
    %v284 = vmul.f32 %v261, %v280
    %v285 = vmul.f32 %v263, %v281
    %v286 = vmul.f32 %v265, %v282
    %v287 = vmul.f32 %v267, %v283
    %v288 = vpack.c.bf16 %v284, %v284
    %v289 = vpack.c.bf16 %v285, %v285
    %v290 = vpack.c.bf16 %v286, %v286
    %v291 = vpack.c.bf16 %v287, %v287
    %v292 = vpack.c.bf16 %v188, %v188
    %v293 = vpack.c.bf16 %v189, %v189
    %v298 = vunpack.c.l.b16 %v288
    %v299 = vunpack.c.l.b16 %v289
    %v300 = vunpack.c.l.b16 %v290
    %v301 = vunpack.c.l.b16 %v291
    %v302 = vpack.c.b16 %v299, %v298
    %v303 = vpack.c.b16 %v301, %v300
    %v306 = vunpack.c.l.b16 %v292
    %v307 = vunpack.c.l.b16 %v293
    %v308 = vpack.c.b16 %v307, %v306
    %v311 = vsel %vm243, %v302, 0
    %v314 = vsel %vm243, %v303, 0
    %316 = vmatpush.bf16.msra.mxu0 0
    %317 = vmatpush.bf16.msra.mxu0 0
    %318 = vmatpush.bf16.msra.mxu0 0
    %319 = vmatpush.bf16.msra.mxu0 0
    %320 = vmatpush.bf16.msra.mxu0 0
    %321 = vmatpush.bf16.msra.mxu0 0
    %322 = vmatpush.bf16.msra.mxu0 0
    %323 = vmatpush.bf16.msra.mxu0 %v308
    %324 = vmatmul.bf16.gmra.mxu0 %v311
    %v325 = vpop.f32.mrf.mxu0
    %v326 = vadd.f32 0.0, %v325
    %v327 = vpop.f32.mrf.mxu0
    %v328 = vadd.f32 0.0, %v327
    %329 = vmatmul.bf16.gmra.mxu0 %v314
    %v330 = vpop.f32.mrf.mxu0
    %v331 = vadd.f32 0.0, %v330
    %v332 = vpop.f32.mrf.mxu0
    %v333 = vadd.f32 0.0, %v332
    %334 = vdwg.mxu0
    %v335 = vmul.f32 %v326, %v89
    %v336 = vmul.f32 %v328, %v90
    %v337 = vmul.f32 %v331, %v91
    %v338 = vmul.f32 %v333, %v92
    %v339 = vadd.f32 %v335, %v336
    %v340 = vadd.f32 %v339, %v337
    %v341 = vadd.f32 %v340, %v338
    %v342 = vpack.c.bf16 %v341, %v341
    %v347 = vunpack.c.l.b16 %v63
    %v348 = vunpack.c.l.b16 %v64
    %v349 = vunpack.c.l.b16 %v65
    %v350 = vunpack.c.l.b16 %v66
    %v351 = vpack.c.b16 %v348, %v347
    %v352 = vpack.c.b16 %v350, %v349
    %v356 = vsel %vm106, %v342, 0
    %358 = vmatpush.bf16.msra.mxu0 0
    %359 = vmatpush.bf16.msra.mxu0 0
    %360 = vmatpush.bf16.msra.mxu0 0
    %361 = vmatpush.bf16.msra.mxu0 0
    %362 = vmatpush.bf16.msra.mxu0 0
    %363 = vmatpush.bf16.msra.mxu0 0
    %364 = vmatpush.bf16.msra.mxu0 %v352
    %365 = vmatpush.bf16.msra.mxu0 %v351
    %366 = vmatmul.bf16.gmra.mxu0 %v356
    %v367 = vpop.f32.mrf.mxu0
    %v368 = vadd.f32 %v82, %v367
    %v369 = vpop.f32.mrf.mxu0
    %370 = vdwg.mxu0
    %v371 = vpack.c.bf16 %v368, %v368
    %v376 = vunpack.c.l.b16 %v67
    %v377 = vunpack.c.l.b16 %v68
    %v378 = vunpack.c.l.b16 %v69
    %v379 = vunpack.c.l.b16 %v70
    %v380 = vpack.c.b16 %v377, %v376
    %v381 = vpack.c.b16 %v379, %v378
    %v385 = vsel %vm106, %v371, 0
    %387 = vmatpush.bf16.msra.mxu0 0
    %388 = vmatpush.bf16.msra.mxu0 0
    %389 = vmatpush.bf16.msra.mxu0 0
    %390 = vmatpush.bf16.msra.mxu0 0
    %391 = vmatpush.bf16.msra.mxu0 0
    %392 = vmatpush.bf16.msra.mxu0 0
    %393 = vmatpush.bf16.msra.mxu0 %v381
    %394 = vmatpush.bf16.msra.mxu0 %v380
    %395 = vmatmul.bf16.gmra.mxu0 %v385
    %v396 = vpop.f32.mrf.mxu0
    %v397 = vadd.f32 %v83, %v396
    %v398 = vpop.f32.mrf.mxu0
    %399 = vdwg.mxu0
    %v400 = vmax.f32 %v397, 0.0
    %v401 = vpack.c.bf16 %v400, %v400
    %v410 = vunpack.c.l.b16 %v71
    %v411 = vunpack.c.l.b16 %v72
    %v412 = vunpack.c.l.b16 %v73
    %v413 = vunpack.c.l.b16 %v74
    %v414 = vunpack.c.l.b16 %v75
    %v415 = vunpack.c.l.b16 %v76
    %v416 = vunpack.c.l.b16 %v77
    %v417 = vunpack.c.l.b16 %v78
    %v418 = vpack.c.b16 %v411, %v410
    %v419 = vpack.c.b16 %v413, %v412
    %v420 = vpack.c.b16 %v415, %v414
    %v421 = vpack.c.b16 %v417, %v416
    %vm426 = vcmask 523264
    %v428 = vsel %vm426, %v401, 0
    %430 = vmatpush.bf16.msra.mxu0 0
    %431 = vmatpush.bf16.msra.mxu0 0
    %432 = vmatpush.bf16.msra.mxu0 0
    %433 = vmatpush.bf16.msra.mxu0 0
    %434 = vmatpush.bf16.msra.mxu0 %v421
    %435 = vmatpush.bf16.msra.mxu0 %v420
    %436 = vmatpush.bf16.msra.mxu0 %v419
    %437 = vmatpush.bf16.msra.mxu0 %v418
    %438 = vmatmul.bf16.gmra.mxu0 %v428
    %v439 = vpop.f32.mrf.mxu0
    %v440 = vadd.f32 %v84, %v439
    %v441 = vpop.f32.mrf.mxu0
    %442 = vdwg.mxu0
    %443 = vst.msk [vmem:[#allocation7] sm:$0xff] %vm106, %v440
    // Predicated region
    $region26: #{_decoder_pallas.1} parent=1 // pred_check
      _
    $region27: #{_decoder_pallas.1} parent=1 // pred_check_branch
      %445 = sbr.rel (0) target = $region29
    $region28: #{_decoder_pallas.1} parent=1 // pred_region
      %447 = vsyncadd [#allocation4], 0
      %s449 = sshll.u32 [#allocation7], 4
      %s450 = int_to_ptr.vmem [resolvable:$true] %s449
      %s451 = sshll.u32 %s4, 4
      %s452 = int_to_ptr.hbm [resolvable:$true] %s451
      %454 = dma.vmem_to_hbm [thread:$0]  %s450, 128, %s452, [#allocation4]
    $region29: #{_decoder_pallas.1} parent=1 // pred_fallthru
      _
    // Predicated region
    $region30: #{_decoder_pallas.1} parent=1 // pred_check
      _
    $region31: #{_decoder_pallas.1} parent=1 // pred_check_branch
      %456 = sbr.rel (0) target = $region33
    $region32: #{_decoder_pallas.1} parent=1 // pred_region
      %458 = dma.done [#allocation4], 128
    $region33: #{_decoder_pallas.1} parent=1 // pred_fallthru
      _
    %459 = vsyncpa [#allocation3], 1
    %460 = vsyncpa [#allocation6], 1
    %461 = vsyncpa [#allocation4], 1

</llo_original>
